<compile_context>
chip_gen: v7x
topology: tpu7x:2x2x1
jax: 0.10.0
libtpu: 0.0.40
codegen_flags: <defaults>
</compile_context>

<pallas_src>
import functools

import jax
import jax.numpy as jnp
from jax.experimental import pallas as pl
from jax.experimental.pallas import tpu as pltpu

_LANES = 128


def _activation(x, kind):
    """relu / selu / elu; exp argument is clamped so the dead branch can't overflow."""
    if kind == "relu":
        return jnp.maximum(x, 0.0)
    if kind == "elu":
        return jnp.where(x > 0, x, jnp.exp(jnp.minimum(x, 0.0)) - 1.0)
    if kind == "selu":
        alpha = 1.6732632423543772
        scale = 1.0507009873554805
        return scale * jnp.where(x > 0, x, alpha * (jnp.exp(jnp.minimum(x, 0.0)) - 1.0))
    raise ValueError(f"activation must be one of relu, selu, elu; got {kind}")


def _make_spatial_block_kernel(layer_meta, activation):
    """Fused conv[k,1] -> activation -> (folded) BN stack for one batch block.

    layer_meta: per-layer dicts of static fields {k, c_in, c_out, has_bias, has_affine}.
    Param refs appear per layer in the order: w2d [, bias] [, scale, shift].
    """

    def kernel(x_ref, *refs):
        o_ref = refs[-1]
        params = refs[:-1]

        h = x_ref[...].astype(jnp.float32)                 # (Bblk, Hin, W, Cin)
        b_blk = h.shape[0]
        w_dim = h.shape[2]

        idx = 0
        for meta in layer_meta:
            k, c_in, c_out = meta["k"], meta["c_in"], meta["c_out"]
            w2d = params[idx][...]                         # (k*Cin, Cout)
            idx += 1
            h_out = h.shape[1] - k + 1

            if c_in == 1:
                # Degenerate contraction (first layer): VPU broadcast-mul path,
                # accumulator initialised with the tap-0 contribution.
                z = h[:, 0:h_out] * w2d[0]
                for dk in range(1, k):
                    z = z + h[:, dk:dk + h_out] * w2d[dk]
            else:
                # Flatten (Bblk, Hout, W) into the MXU M dimension and do one
                # lane-dense 2-D dot per tap, accumulating in f32.
                m = b_blk * h_out * w_dim
                z = None
                for dk in range(k):                        # static unroll over taps
                    xs = h[:, dk:dk + h_out].reshape(m, c_in)
                    part = jnp.dot(xs, w2d[dk * c_in:(dk + 1) * c_in],
                                   preferred_element_type=jnp.float32)
                    z = part if z is None else z + part

            if meta["has_bias"]:                           # folded previous-layer BN shift
                z = z + params[idx][...]                   # (1, Cout) lane broadcast
                idx += 1

            z = _activation(z, activation)

            if meta["has_affine"]:                         # only the last layer
                z = z * params[idx][...] + params[idx + 1][...]
                idx += 2

            h = z if z.ndim == 4 else z.reshape(b_blk, h_out, w_dim, c_out)

        o_ref[...] = h.astype(o_ref.dtype)

    return kernel


@functools.partial(jax.jit, static_argnames=("activation", "num_batch_blocks"))
def spatial_block_forward(x_nchw, params, activation="relu", num_batch_blocks=2):
    """x_nchw: (B, 1, H, W) f32; params: per-layer dicts of conv weight + BN stats.

    Returns (B, Cout_last, Hout_last, W) f32, matching the PyTorch module output.
    """
    eps = 1e-5
    b, c0, h0, w0 = x_nchw.shape
    n_layer = len(params)

    # Channels-last for the kernel: channels ride the 128-lane axis.
    x = jnp.transpose(x_nchw.astype(jnp.float32), (0, 2, 3, 1))     # (B, H, W, C)

    # Few fat grid steps: default 2 (keeps both v7x cores busy; cheap on v5e/v6e).
    n_blocks = max(1, min(b, num_batch_blocks))
    b_blk = -(-b // n_blocks)
    n_blocks = -(-b // b_blk)
    b_pad = n_blocks * b_blk
    if b_pad != b:
        x = jnp.pad(x, ((0, b_pad - b), (0, 0), (0, 0), (0, 0)))

    inputs = [x]
    in_specs = [pl.BlockSpec((b_blk, h0, w0, c0), lambda i: (i, 0, 0, 0))]
    layer_meta = []

    flops = 0
    transcendentals = 0
    vmem_est = 4 * b_blk * h0 * w0 * _LANES

    h_cur, c_cur = h0, c0
    prev_scale = prev_shift = None
    for li, p in enumerate(params):
        wt = p["weight"].astype(jnp.float32)                # (Cout, Cin, K, 1) torch layout
        c_out, c_in, k, _ = wt.shape
        assert c_in == c_cur, (c_in, c_cur)
        last = li == n_layer - 1

        w_oik = wt[:, :, :, 0]                              # (Cout, Cin, K)
        bias = None
        if prev_scale is not None:
            # Fold previous layer's BN affine into this conv: conv(a*s+t) = conv_s(a) + bias.
            bias = jnp.einsum("oik,i->o", w_oik, prev_shift)
            w_oik = w_oik * prev_scale[None, :, None]

        scale = (p["gamma"] / jnp.sqrt(p["var"] + eps)).astype(jnp.float32)
        shift = (p["beta"] - p["mean"] * scale).astype(jnp.float32)

        # Last layer: pad Cout to a lane multiple so the HBM store is unmasked.
        c_store = -(-c_out // _LANES) * _LANES if last else c_out

        w2d = jnp.transpose(w_oik, (2, 1, 0)).reshape(k * c_in, c_out)  # (K*Cin, Cout)
        if c_store != c_out:
            w2d = jnp.pad(w2d, ((0, 0), (0, c_store - c_out)))
        inputs.append(w2d)
        in_specs.append(pl.BlockSpec((k * c_in, c_store), lambda i: (0, 0)))

        if bias is not None:
            bias = bias.reshape(1, c_out)
            if c_store != c_out:
                bias = jnp.pad(bias, ((0, 0), (0, c_store - c_out)))
            inputs.append(bias)
            in_specs.append(pl.BlockSpec((1, c_store), lambda i: (0, 0)))
        if last:
            sc = scale.reshape(1, c_out)
            sh = shift.reshape(1, c_out)
            if c_store != c_out:
                sc = jnp.pad(sc, ((0, 0), (0, c_store - c_out)))
                sh = jnp.pad(sh, ((0, 0), (0, c_store - c_out)))
            inputs += [sc, sh]
            in_specs += [pl.BlockSpec((1, c_store), lambda i: (0, 0)),
                         pl.BlockSpec((1, c_store), lambda i: (0, 0))]

        layer_meta.append(dict(k=k, c_in=c_in, c_out=c_store,
                               has_bias=bias is not None, has_affine=last))

        h_next = h_cur - k + 1
        flops += 2 * b_pad * h_next * w0 * (k * c_in) * c_out   # conv MACs
        flops += 4 * b_pad * h_next * w0 * c_out                # act + bias/affine
        if activation in ("elu", "selu"):
            transcendentals += b_pad * h_next * w0 * c_out
        vmem_est += 4 * b_blk * h_next * w0 * _LANES
        h_cur, c_cur = h_next, c_out
        prev_scale, prev_shift = (None, None) if last else (scale, shift)

    c_last = c_cur
    c_store_last = -(-c_last // _LANES) * _LANES

    bytes_accessed = (4 * b_pad * h0 * w0 * c0
                      + 4 * b_pad * h_cur * w0 * c_store_last
                      + sum(int(a.size) * 4 for a in inputs[1:]))
    vmem_limit = int(min(max(3 * vmem_est, 32 * 1024 * 1024), 64 * 1024 * 1024))

    out = pl.pallas_call(
        _make_spatial_block_kernel(tuple(layer_meta), activation),
        out_shape=jax.ShapeDtypeStruct((b_pad, h_cur, w0, c_store_last), jnp.float32),
        grid_spec=pltpu.PrefetchScalarGridSpec(
            num_scalar_prefetch=0,
            grid=(n_blocks,),
            in_specs=in_specs,
            out_specs=pl.BlockSpec((b_blk, h_cur, w0, c_store_last),
                                   lambda i: (i, 0, 0, 0)),
        ),
        compiler_params=pltpu.CompilerParams(
            dimension_semantics=("parallel",),               # batch blocks are independent
            vmem_limit_bytes=vmem_limit,
        ),
        cost_estimate=pl.CostEstimate(
            flops=int(flops),
            transcendentals=int(transcendentals),
            bytes_accessed=int(bytes_accessed)),
    )(*inputs)

    out = out[:b, :, :, :c_last]                             # drop batch / lane padding
    return jnp.transpose(out, (0, 3, 1, 2))                  # back to NCHW


def spatial_block_reference(x_nchw, params, activation="relu"):
    """Pure-JAX reference (eval-mode BN) for correctness checking."""
    eps = 1e-5
    x = x_nchw.astype(jnp.float32)
    for p in params:
        wt = p["weight"].astype(jnp.float32)                 # (Cout, Cin, K, 1)
        x = jax.lax.conv_general_dilated(
            x, wt, window_strides=(1, 1), padding="VALID",
            dimension_numbers=("NCHW", "OIHW", "NCHW"),
            precision=jax.lax.Precision.HIGHEST)
        x = _activation(x, activation)
        scale = p["gamma"] / jnp.sqrt(p["var"] + eps)
        shift = p["beta"] - p["mean"] * scale
        x = x * scale[None, :, None, None] + shift[None, :, None, None]
    return x


def init_params(key, n_layer, kernel_size):
    """Deterministic params matching the SpatialBlock channel schedule."""
    out_ch = [16 * (i + 1) for i in range(n_layer)]
    in_ch = [1 if i == 0 else 16 * i for i in range(n_layer)]
    params = []
    for i in range(n_layer):
        key, kw, kg, kb, km, kv = jax.random.split(key, 6)
        fan_in = in_ch[i] * kernel_size[i]
        bound = 1.0 / jnp.sqrt(jnp.float32(fan_in))
        weight = jax.random.uniform(
            kw, (out_ch[i], in_ch[i], kernel_size[i], 1), jnp.float32, -bound, bound)
        gamma = jax.random.uniform(kg, (out_ch[i],), jnp.float32, 0.5, 1.5)
        beta = jax.random.uniform(kb, (out_ch[i],), jnp.float32, -0.1, 0.1)
        mean = jax.random.uniform(km, (out_ch[i],), jnp.float32, -0.1, 0.1)
        var = jax.random.uniform(kv, (out_ch[i],), jnp.float32, 0.5, 1.5)
        params.append(dict(weight=weight, gamma=gamma, beta=beta, mean=mean, var=var))
    return params


if __name__ == "__main__":
    key = jax.random.PRNGKey(0)
    k_x, k_p = jax.random.split(key)

    # SpatialBlock(n_layer=2, kernel_size=[3, 3], activation=..., bias=False)
    n_layer = 2
    kernel_size = [3, 3]

    B, H, W = 2, 16, 8
    x = jax.random.normal(k_x, (B, 1, H, W), dtype=jnp.float32)
    params = init_params(k_p, n_layer, kernel_size)

    out_shape = (B, 16 * n_layer, H - sum(k - 1 for k in kernel_size), W)
    for act in ("relu", "elu"):
        y = spatial_block_forward(x, params, activation=act)
        jax.block_until_ready(y)
        y_ref = spatial_block_reference(x, params, activation=act)
        assert y.shape == out_shape, (act, y.shape)
        err = float(jnp.max(jnp.abs(y - y_ref)))
        assert jnp.allclose(y, y_ref, rtol=1e-4, atol=1e-4), (act, err)

    print("KERNEL_OK")
</pallas_src>

<mosaic_0001>
module attributes {stable_mosaic.version = 11 : i64} {
  func.func @kernel(%arg0: i32, %arg1: memref<1x16x8x1xf32, #tpu.memory_space<vmem>>, %arg2: memref<3x16xf32, #tpu.memory_space<vmem>>, %arg3: memref<48x128xf32, #tpu.memory_space<vmem>>, %arg4: memref<1x128xf32, #tpu.memory_space<vmem>>, %arg5: memref<1x128xf32, #tpu.memory_space<vmem>>, %arg6: memref<1x128xf32, #tpu.memory_space<vmem>>, %arg7: memref<1x12x8x128xf32, #tpu.memory_space<vmem>>) attributes {dimension_semantics = [#tpu.dimension_semantics<parallel>], iteration_bounds = array<i64: 2>, scalar_prefetch = 0 : i64, scratch_operands = 0 : i64, tpu.core_type = #tpu.core_type<tc>, window_params = [{transform_indices = @transform_0, window_bounds = array<i64: 1, 16, 8, 1>}, {pipeline_mode = #tpu.pipeline_mode<synchronous>, transform_indices = @transform_1, window_bounds = array<i64: 3, 16>}, {pipeline_mode = #tpu.pipeline_mode<synchronous>, transform_indices = @transform_2, window_bounds = array<i64: 48, 128>}, {pipeline_mode = #tpu.pipeline_mode<synchronous>, transform_indices = @transform_3, window_bounds = array<i64: 1, 128>}, {pipeline_mode = #tpu.pipeline_mode<synchronous>, transform_indices = @transform_4, window_bounds = array<i64: 1, 128>}, {pipeline_mode = #tpu.pipeline_mode<synchronous>, transform_indices = @transform_5, window_bounds = array<i64: 1, 128>}, {transform_indices = @transform_6, window_bounds = array<i64: 1, 12, 8, 128>}]} {
    %c0 = arith.constant 0 : index
    %c0_0 = arith.constant 0 : index
    %c0_1 = arith.constant 0 : index
    %c0_2 = arith.constant 0 : index
    %0 = vector.load %arg1[%c0, %c0_0, %c0_1, %c0_2] : memref<1x16x8x1xf32, #tpu.memory_space<vmem>>, vector<1x16x8x1xf32>
    %c0_3 = arith.constant 0 : index
    %c0_4 = arith.constant 0 : index
    %1 = vector.load %arg2[%c0_3, %c0_4] : memref<3x16xf32, #tpu.memory_space<vmem>>, vector<3x16xf32>
    %2 = vector.extract_strided_slice %0 {offsets = [0, 0, 0, 0], sizes = [1, 14, 8, 1], strides = [1, 1, 1, 1]} : vector<1x16x8x1xf32> to vector<1x14x8x1xf32>
    %3 = vector.extract_strided_slice %1 {offsets = [0, 0], sizes = [1, 16], strides = [1, 1]} : vector<3x16xf32> to vector<1x16xf32>
    %4 = vector.shape_cast %3 : vector<1x16xf32> to vector<16xf32>
    %5 = vector.shape_cast %4 : vector<16xf32> to vector<1x1x1x16xf32>
    %6 = vector.broadcast %2 : vector<1x14x8x1xf32> to vector<1x14x8x16xf32>
    %7 = vector.broadcast %5 : vector<1x1x1x16xf32> to vector<1x14x8x16xf32>
    %8 = arith.mulf %6, %7 : vector<1x14x8x16xf32>
    %9 = vector.extract_strided_slice %0 {offsets = [0, 1, 0, 0], sizes = [1, 14, 8, 1], strides = [1, 1, 1, 1]} : vector<1x16x8x1xf32> to vector<1x14x8x1xf32>
    %10 = vector.extract_strided_slice %1 {offsets = [1, 0], sizes = [1, 16], strides = [1, 1]} : vector<3x16xf32> to vector<1x16xf32>
    %11 = vector.shape_cast %10 : vector<1x16xf32> to vector<16xf32>
    %12 = vector.shape_cast %11 : vector<16xf32> to vector<1x1x1x16xf32>
    %13 = vector.broadcast %9 : vector<1x14x8x1xf32> to vector<1x14x8x16xf32>
    %14 = vector.broadcast %12 : vector<1x1x1x16xf32> to vector<1x14x8x16xf32>
    %15 = arith.mulf %13, %14 : vector<1x14x8x16xf32>
    %16 = arith.addf %8, %15 : vector<1x14x8x16xf32>
    %17 = vector.extract_strided_slice %0 {offsets = [0, 2, 0, 0], sizes = [1, 14, 8, 1], strides = [1, 1, 1, 1]} : vector<1x16x8x1xf32> to vector<1x14x8x1xf32>
    %18 = vector.extract_strided_slice %1 {offsets = [2, 0], sizes = [1, 16], strides = [1, 1]} : vector<3x16xf32> to vector<1x16xf32>
    %19 = vector.shape_cast %18 : vector<1x16xf32> to vector<16xf32>
    %20 = vector.shape_cast %19 : vector<16xf32> to vector<1x1x1x16xf32>
    %21 = vector.broadcast %17 : vector<1x14x8x1xf32> to vector<1x14x8x16xf32>
    %22 = vector.broadcast %20 : vector<1x1x1x16xf32> to vector<1x14x8x16xf32>
    %23 = arith.mulf %21, %22 : vector<1x14x8x16xf32>
    %24 = arith.addf %16, %23 : vector<1x14x8x16xf32>
    %cst = arith.constant 0.000000e+00 : f32
    %25 = vector.broadcast %cst : f32 to vector<1x14x8x16xf32>
    %26 = arith.maximumf %24, %25 : vector<1x14x8x16xf32>
    %c0_5 = arith.constant 0 : index
    %c0_6 = arith.constant 0 : index
    %27 = vector.load %arg3[%c0_5, %c0_6] : memref<48x128xf32, #tpu.memory_space<vmem>>, vector<48x128xf32>
    %28 = vector.extract_strided_slice %26 {offsets = [0, 0, 0, 0], sizes = [1, 12, 8, 16], strides = [1, 1, 1, 1]} : vector<1x14x8x16xf32> to vector<1x12x8x16xf32>
    %29 = vector.shape_cast %28 : vector<1x12x8x16xf32> to vector<96x16xf32>
    %30 = vector.extract_strided_slice %27 {offsets = [0, 0], sizes = [16, 128], strides = [1, 1]} : vector<48x128xf32> to vector<16x128xf32>
    %cst_7 = arith.constant dense<0.000000e+00> : vector<96x128xf32>
    %31 = tpu.matmul %29, %30, %cst_7 {dimension_numbers = #tpu.dot_dimension_numbers<[1], [0], [0], [1], [0, 0, 1, 1], [], []>} : vector<96x16xf32>, vector<16x128xf32>, vector<96x128xf32> -> vector<96x128xf32>
    %32 = vector.extract_strided_slice %26 {offsets = [0, 1, 0, 0], sizes = [1, 12, 8, 16], strides = [1, 1, 1, 1]} : vector<1x14x8x16xf32> to vector<1x12x8x16xf32>
    %33 = vector.shape_cast %32 : vector<1x12x8x16xf32> to vector<96x16xf32>
    %34 = vector.extract_strided_slice %27 {offsets = [16, 0], sizes = [16, 128], strides = [1, 1]} : vector<48x128xf32> to vector<16x128xf32>
    %cst_8 = arith.constant dense<0.000000e+00> : vector<96x128xf32>
    %35 = tpu.matmul %33, %34, %cst_8 {dimension_numbers = #tpu.dot_dimension_numbers<[1], [0], [0], [1], [0, 0, 1, 1], [], []>} : vector<96x16xf32>, vector<16x128xf32>, vector<96x128xf32> -> vector<96x128xf32>
    %36 = arith.addf %31, %35 : vector<96x128xf32>
    %37 = vector.extract_strided_slice %26 {offsets = [0, 2, 0, 0], sizes = [1, 12, 8, 16], strides = [1, 1, 1, 1]} : vector<1x14x8x16xf32> to vector<1x12x8x16xf32>
    %38 = vector.shape_cast %37 : vector<1x12x8x16xf32> to vector<96x16xf32>
    %39 = vector.extract_strided_slice %27 {offsets = [32, 0], sizes = [16, 128], strides = [1, 1]} : vector<48x128xf32> to vector<16x128xf32>
    %cst_9 = arith.constant dense<0.000000e+00> : vector<96x128xf32>
    %40 = tpu.matmul %38, %39, %cst_9 {dimension_numbers = #tpu.dot_dimension_numbers<[1], [0], [0], [1], [0, 0, 1, 1], [], []>} : vector<96x16xf32>, vector<16x128xf32>, vector<96x128xf32> -> vector<96x128xf32>
    %41 = arith.addf %36, %40 : vector<96x128xf32>
    %c0_10 = arith.constant 0 : index
    %c0_11 = arith.constant 0 : index
    %42 = vector.load %arg4[%c0_10, %c0_11] : memref<1x128xf32, #tpu.memory_space<vmem>>, vector<1x128xf32>
    %43 = vector.broadcast %42 : vector<1x128xf32> to vector<96x128xf32>
    %44 = arith.addf %41, %43 : vector<96x128xf32>
    %cst_12 = arith.constant 0.000000e+00 : f32
    %45 = vector.broadcast %cst_12 : f32 to vector<96x128xf32>
    %46 = arith.maximumf %44, %45 : vector<96x128xf32>
    %c0_13 = arith.constant 0 : index
    %c0_14 = arith.constant 0 : index
    %47 = vector.load %arg5[%c0_13, %c0_14] : memref<1x128xf32, #tpu.memory_space<vmem>>, vector<1x128xf32>
    %48 = vector.broadcast %47 : vector<1x128xf32> to vector<96x128xf32>
    %49 = arith.mulf %46, %48 : vector<96x128xf32>
    %c0_15 = arith.constant 0 : index
    %c0_16 = arith.constant 0 : index
    %50 = vector.load %arg6[%c0_15, %c0_16] : memref<1x128xf32, #tpu.memory_space<vmem>>, vector<1x128xf32>
    %51 = vector.broadcast %50 : vector<1x128xf32> to vector<96x128xf32>
    %52 = arith.addf %49, %51 : vector<96x128xf32>
    %53 = vector.shape_cast %52 : vector<96x128xf32> to vector<1x12x8x128xf32>
    %c0_17 = arith.constant 0 : index
    %c0_18 = arith.constant 0 : index
    %c0_19 = arith.constant 0 : index
    %c0_20 = arith.constant 0 : index
    %54 = vector.load %arg7[%c0_17, %c0_18, %c0_19, %c0_20] : memref<1x12x8x128xf32, #tpu.memory_space<vmem>>, vector<1x12x8x128xf32>
    tpu.vector_store %arg7[%c0_17, %c0_18, %c0_19, %c0_20], %53 {strides = array<i32>} : memref<1x12x8x128xf32, #tpu.memory_space<vmem>>, vector<1x12x8x128xf32>,
    return
  }
  func.func @transform_0(%arg0: i32) -> (i32, i32, i32, i32) {
    %c0_i32 = arith.constant 0 : i32
    %c0_i32_0 = arith.constant 0 : i32
    %c0_i32_1 = arith.constant 0 : i32
    %c0_i32_2 = arith.constant 0 : i32
    return %arg0, %c0_i32, %c0_i32_0, %c0_i32_1 : i32, i32, i32, i32
  }
  func.func @transform_1(%arg0: i32) -> (i32, i32) {
    %c0_i32 = arith.constant 0 : i32
    %c0_i32_0 = arith.constant 0 : i32
    %c0_i32_1 = arith.constant 0 : i32
    return %c0_i32, %c0_i32_0 : i32, i32
  }
  func.func @transform_2(%arg0: i32) -> (i32, i32) {
    %c0_i32 = arith.constant 0 : i32
    %c0_i32_0 = arith.constant 0 : i32
    %c0_i32_1 = arith.constant 0 : i32
    return %c0_i32, %c0_i32_0 : i32, i32
  }
  func.func @transform_3(%arg0: i32) -> (i32, i32) {
    %c0_i32 = arith.constant 0 : i32
    %c0_i32_0 = arith.constant 0 : i32
    %c0_i32_1 = arith.constant 0 : i32
    return %c0_i32, %c0_i32_0 : i32, i32
  }
  func.func @transform_4(%arg0: i32) -> (i32, i32) {
    %c0_i32 = arith.constant 0 : i32
    %c0_i32_0 = arith.constant 0 : i32
    %c0_i32_1 = arith.constant 0 : i32
    return %c0_i32, %c0_i32_0 : i32, i32
  }
  func.func @transform_5(%arg0: i32) -> (i32, i32) {
    %c0_i32 = arith.constant 0 : i32
    %c0_i32_0 = arith.constant 0 : i32
    %c0_i32_1 = arith.constant 0 : i32
    return %c0_i32, %c0_i32_0 : i32, i32
  }
  func.func @transform_6(%arg0: i32) -> (i32, i32, i32, i32) {
    %c0_i32 = arith.constant 0 : i32
    %c0_i32_0 = arith.constant 0 : i32
    %c0_i32_1 = arith.constant 0 : i32
    %c0_i32_2 = arith.constant 0 : i32
    return %arg0, %c0_i32, %c0_i32_0, %c0_i32_1 : i32, i32, i32, i32
  }
}

</mosaic_0001>

<llo_original>
// kernel: spatial_block_forward.1
$region0: #{spatial_block_forward.1}
  #allocation0 [shape = 'u32[]', space=smem, size = 0x4, offset = 0x4, fixed_abs, tag = 'smem constant byte address 0x4 - core index']
  #allocation1 [shape = 'u32[144,128]{1,0:T(1,128)}', space=vmem, size = 0x12000, scoped, tag = 'internal scratch']
  %s0 = inlined_call_operand.vmem [shape: f32[2,16,8,1], index: 0, kind: input, shape index: {}]
  %s1 = inlined_call_operand.vmem [shape: f32[3,16], index: 1, kind: input, shape index: {}]
  %s2 = inlined_call_operand.vmem [shape: f32[48,128], index: 2, kind: input, shape index: {}]
  %s3 = inlined_call_operand.vmem [shape: f32[1,128], index: 3, kind: input, shape index: {}]
  %s4 = inlined_call_operand.vmem [shape: f32[1,128], index: 4, kind: input, shape index: {}]
  %s5 = inlined_call_operand.vmem [shape: f32[1,128], index: 5, kind: input, shape index: {}]
  %s6 = inlined_call_operand.vmem [shape: f32[2,12,8,128], index: 6, kind: output, shape index: {}]
  %s7 = sld [smem:[#allocation0]]
  $region57: #{spatial_block_forward.1} parent=0
    _
  %s9 = ssub.s32 1, %s7
  %s10 = scalar_select 0, %s9, %s7
  loop: start=0, step=1, limit=4
  $region2: #{spatial_block_forward.1} parent=0 // loop_pre_header
    _
  $region3: #{spatial_block_forward.1} parent=0 // loop_header
    %s12 = sphi 0, %s16
    %p13 = scmp.ge.s32.totalorder %s12, 4
    %s22 = sphi 0, %s24
    %s25 = sphi 0, %s22
    %s26 = sphi 0, %s25
    %s42 = sphi 0, %s26
    %s46 = sphi 0, %s46
    %s48 = sphi 0, %s46
    %s49 = sphi 0, %s48
    %s63 = sphi 0, %s49
    %s67 = sphi 0, %s67
    %s69 = sphi 0, %s67
    %s70 = sphi 0, %s69
    %s84 = sphi 0, %s70
    %s88 = sphi 0, %s88
    %s90 = sphi 0, %s88
    %s91 = sphi 0, %s90
    %s105 = sphi 0, %s91
    %s109 = sphi 0, %s109
    %s111 = sphi 0, %s109
    %s112 = sphi 0, %s111
    %s126 = sphi 0, %s112
    %s130 = sphi 0, %s130
    %s132 = sphi 0, %s130
    %s133 = sphi 0, %s132
    %s147 = sphi 0, %s133
    %s153 = sphi 0, %s155
    %s156 = sphi 0, %s153
    %s157 = sphi 0, %s156
    %s173 = sphi 0, %s157
  $region4: #{spatial_block_forward.1} parent=0 // loop_header_branch
    %15 = sbr.rel (%p13) target = $region8
  $region5: #{spatial_block_forward.1} parent=0 // loop_body
    %s17 = ssub.s32 %s12, 1
    %s18 = ssub.s32 %s12, 2
    %s19 = sadd.s32 %s12, 1
    %s20 = ssub.s32 %s12, %s19
    %p21 = scmp.eq.s32.totalorder %s20, 0
    %s23 = sadd.s32 %s22, 1
    %s24 = scalar_select %p21, %s22, %s23
    %p27 = pneg %p21
    %p28 = scmp.eq.s32.totalorder %s12, 1
    %p29 = por %p27, %p28
    %p30 = scmp.ne.s32.totalorder %s22, %s25
    %p31 = scmp.eq.s32.totalorder %s12, 0
    %p32 = por %p30, %p31
    %p33 = scmp.ne.s32.totalorder %s22, %s25
    %p34 = scmp.eq.s32.totalorder %s17, 1
    %p35 = por %p33, %p34
    %p36 = scmp.ne.s32.totalorder %s25, %s26
    %p37 = scmp.eq.s32.totalorder %s17, 0
    %p38 = por %p36, %p37
    %p39 = scmp.ne.s32.totalorder %s25, %s26
    %p40 = scmp.eq.s32.totalorder %s18, 1
    %p41 = por %p39, %p40
    %p43 = scmp.ne.s32.totalorder %s26, %s42
    %p44 = scmp.eq.s32.totalorder %s18, 0
    %p45 = por %p43, %p44
    %s47 = sadd.s32 %s46, 1
    %p50 = scmp.eq.s32.totalorder %s12, 1
    %p51 = scmp.ne.s32.totalorder %s46, %s48
    %p52 = scmp.eq.s32.totalorder %s12, 0
    %p53 = por %p51, %p52
    %p54 = scmp.ne.s32.totalorder %s46, %s48
    %p55 = scmp.eq.s32.totalorder %s17, 1
    %p56 = por %p54, %p55
    %p57 = scmp.ne.s32.totalorder %s48, %s49
    %p58 = scmp.eq.s32.totalorder %s17, 0
    %p59 = por %p57, %p58
    %p60 = scmp.ne.s32.totalorder %s48, %s49
    %p61 = scmp.eq.s32.totalorder %s18, 1
    %p62 = por %p60, %p61
    %p64 = scmp.ne.s32.totalorder %s49, %s63
    %p65 = scmp.eq.s32.totalorder %s18, 0
    %p66 = por %p64, %p65
    %s68 = sadd.s32 %s67, 1
    %p71 = scmp.eq.s32.totalorder %s12, 1
    %p72 = scmp.ne.s32.totalorder %s67, %s69
    %p73 = scmp.eq.s32.totalorder %s12, 0
    %p74 = por %p72, %p73
    %p75 = scmp.ne.s32.totalorder %s67, %s69
    %p76 = scmp.eq.s32.totalorder %s17, 1
    %p77 = por %p75, %p76
    %p78 = scmp.ne.s32.totalorder %s69, %s70
    %p79 = scmp.eq.s32.totalorder %s17, 0
    %p80 = por %p78, %p79
    %p81 = scmp.ne.s32.totalorder %s69, %s70
    %p82 = scmp.eq.s32.totalorder %s18, 1
    %p83 = por %p81, %p82
    %p85 = scmp.ne.s32.totalorder %s70, %s84
    %p86 = scmp.eq.s32.totalorder %s18, 0
    %p87 = por %p85, %p86
    %s89 = sadd.s32 %s88, 1
    %p92 = scmp.eq.s32.totalorder %s12, 1
    %p93 = scmp.ne.s32.totalorder %s88, %s90
    %p94 = scmp.eq.s32.totalorder %s12, 0
    %p95 = por %p93, %p94
    %p96 = scmp.ne.s32.totalorder %s88, %s90
    %p97 = scmp.eq.s32.totalorder %s17, 1
    %p98 = por %p96, %p97
    %p99 = scmp.ne.s32.totalorder %s90, %s91
    %p100 = scmp.eq.s32.totalorder %s17, 0
    %p101 = por %p99, %p100
    %p102 = scmp.ne.s32.totalorder %s90, %s91
    %p103 = scmp.eq.s32.totalorder %s18, 1
    %p104 = por %p102, %p103
    %p106 = scmp.ne.s32.totalorder %s91, %s105
    %p107 = scmp.eq.s32.totalorder %s18, 0
    %p108 = por %p106, %p107
    %s110 = sadd.s32 %s109, 1
    %p113 = scmp.eq.s32.totalorder %s12, 1
    %p114 = scmp.ne.s32.totalorder %s109, %s111
    %p115 = scmp.eq.s32.totalorder %s12, 0
    %p116 = por %p114, %p115
    %p117 = scmp.ne.s32.totalorder %s109, %s111
    %p118 = scmp.eq.s32.totalorder %s17, 1
    %p119 = por %p117, %p118
    %p120 = scmp.ne.s32.totalorder %s111, %s112
    %p121 = scmp.eq.s32.totalorder %s17, 0
    %p122 = por %p120, %p121
    %p123 = scmp.ne.s32.totalorder %s111, %s112
    %p124 = scmp.eq.s32.totalorder %s18, 1
    %p125 = por %p123, %p124
    %p127 = scmp.ne.s32.totalorder %s112, %s126
    %p128 = scmp.eq.s32.totalorder %s18, 0
    %p129 = por %p127, %p128
    %s131 = sadd.s32 %s130, 1
    %p134 = scmp.eq.s32.totalorder %s12, 1
    %p135 = scmp.ne.s32.totalorder %s130, %s132
    %p136 = scmp.eq.s32.totalorder %s12, 0
    %p137 = por %p135, %p136
    %p138 = scmp.ne.s32.totalorder %s130, %s132
    %p139 = scmp.eq.s32.totalorder %s17, 1
    %p140 = por %p138, %p139
    %p141 = scmp.ne.s32.totalorder %s132, %s133
    %p142 = scmp.eq.s32.totalorder %s17, 0
    %p143 = por %p141, %p142
    %p144 = scmp.ne.s32.totalorder %s132, %s133
    %p145 = scmp.eq.s32.totalorder %s18, 1
    %p146 = por %p144, %p145
    %p148 = scmp.ne.s32.totalorder %s133, %s147
    %p149 = scmp.eq.s32.totalorder %s18, 0
    %p150 = por %p148, %p149
    %s151 = ssub.s32 %s12, %s19
    %p152 = scmp.eq.s32.totalorder %s151, 0
    %s154 = sadd.s32 %s153, 1
    %s155 = scalar_select %p152, %s153, %s154
    %p158 = pneg %p152
    %p159 = scmp.eq.s32.totalorder %s12, 1
    %p160 = por %p158, %p159
    %p161 = scmp.ne.s32.totalorder %s153, %s156
    %p162 = scmp.eq.s32.totalorder %s12, 0
    %p163 = por %p161, %p162
    %p164 = scmp.ne.s32.totalorder %s153, %s156
    %p165 = scmp.eq.s32.totalorder %s17, 1
    %p166 = por %p164, %p165
    %p167 = scmp.ne.s32.totalorder %s156, %s157
    %p168 = scmp.eq.s32.totalorder %s17, 0
    %p169 = por %p167, %p168
    %p170 = scmp.ne.s32.totalorder %s156, %s157
    %p171 = scmp.eq.s32.totalorder %s18, 1
    %p172 = por %p170, %p171
    %p174 = scmp.ne.s32.totalorder %s157, %s173
    %p175 = scmp.eq.s32.totalorder %s18, 0
    %p176 = por %p174, %p175
    %p177 = scmp.le.s32.totalorder 1, %s12
    %p178 = scmp.lt.s32.totalorder %s12, 3
    %p179 = pnand %p177, %p178
    %p180 = pneg %p179
    // Predicated region
    $region9: #{spatial_block_forward.1} parent=5 // pred_check
      _
    $region10: #{spatial_block_forward.1} parent=5 // pred_check_branch
      %182 = sbr.rel (%p179) target = $region12
    $region11: #{spatial_block_forward.1} parent=5 // pred_region
      %s183 = ssub.s32 %s12, 1
      // Predicated region
      $region13: #{spatial_block_forward.1} parent=11 // pred_check
        %p184 = pneg %p59
      $region14: #{spatial_block_forward.1} parent=11 // pred_check_branch
        %186 = sbr.rel (%p184) target = $region16
      $region15: #{spatial_block_forward.1} parent=11 // pred_region
        _
      $region16: #{spatial_block_forward.1} parent=11 // pred_fallthru
        _
      // Predicated region
      $region17: #{spatial_block_forward.1} parent=11 // pred_check
        %p187 = pneg %p80
      $region18: #{spatial_block_forward.1} parent=11 // pred_check_branch
        %189 = sbr.rel (%p187) target = $region20
      $region19: #{spatial_block_forward.1} parent=11 // pred_region
        _
      $region20: #{spatial_block_forward.1} parent=11 // pred_fallthru
        _
      // Predicated region
      $region21: #{spatial_block_forward.1} parent=11 // pred_check
        %p190 = pneg %p101
      $region22: #{spatial_block_forward.1} parent=11 // pred_check_branch
        %192 = sbr.rel (%p190) target = $region24
      $region23: #{spatial_block_forward.1} parent=11 // pred_region
        _
      $region24: #{spatial_block_forward.1} parent=11 // pred_fallthru
        _
      // Predicated region
      $region25: #{spatial_block_forward.1} parent=11 // pred_check
        %p193 = pneg %p122
      $region26: #{spatial_block_forward.1} parent=11 // pred_check_branch
        %195 = sbr.rel (%p193) target = $region28
      $region27: #{spatial_block_forward.1} parent=11 // pred_region
        _
      $region28: #{spatial_block_forward.1} parent=11 // pred_fallthru
        _
      // Predicated region
      $region29: #{spatial_block_forward.1} parent=11 // pred_check
        %p196 = pneg %p143
      $region30: #{spatial_block_forward.1} parent=11 // pred_check_branch
        %198 = sbr.rel (%p196) target = $region32
      $region31: #{spatial_block_forward.1} parent=11 // pred_region
        _
      $region32: #{spatial_block_forward.1} parent=11 // pred_fallthru
        _
    $region12: #{spatial_block_forward.1} parent=5 // pred_fallthru
      _
    %p199 = scmp.lt.s32.totalorder %s12, 2
    // Predicated region
    $region33: #{spatial_block_forward.1} parent=5 // pred_check
      %p200 = pneg %p199
    $region34: #{spatial_block_forward.1} parent=5 // pred_check_branch
      %202 = sbr.rel (%p200) target = $region36
    $region35: #{spatial_block_forward.1} parent=5 // pred_region
      // Predicated region
      $region37: #{spatial_block_forward.1} parent=35 // pred_check
        %p203 = pneg %p32
      $region38: #{spatial_block_forward.1} parent=35 // pred_check_branch
        %205 = sbr.rel (%p203) target = $region40
      $region39: #{spatial_block_forward.1} parent=35 // pred_region
        %p206 = scmp.lt.s32.totalorder %s12, 1
        %s207 = scalar_select %p206, %s12, 1
        %s208 = smul.addr %s207, 16
        %s209 = smul.addr %s208, 8
        %s210 = scalar_lea.vmem %s0, %s209
      $region40: #{spatial_block_forward.1} parent=35 // pred_fallthru
        _
    $region36: #{spatial_block_forward.1} parent=5 // pred_fallthru
      _
    %p211 = scmp.le.s32.totalorder 1, %s12
    %p212 = scmp.lt.s32.totalorder %s12, 3
    %p213 = pnand %p211, %p212
    %p214 = pneg %p213
    // Predicated region
    $region41: #{spatial_block_forward.1} parent=5 // pred_check
      _
    $region42: #{spatial_block_forward.1} parent=5 // pred_check_branch
      %216 = sbr.rel (%p213) target = $region44
    $region43: #{spatial_block_forward.1} parent=5 // pred_region
      %s217 = ssub.s32 %s12, 1
      %p218 = scmp.lt.s32.totalorder %s17, 1
      %s219 = scalar_select %p218, %s17, 1
      %s220 = smul.addr %s219, 16
      %s221 = smul.addr %s220, 8
      %s222 = scalar_lea.vmem %s0, %s221
      %p223 = pneg %p38
      %p224 = pneg %p35
      %p225 = pneg %p59
      %p226 = pneg %p56
      %p227 = pneg %p80
      %p228 = pneg %p77
      %p229 = pneg %p101
      %p230 = pneg %p98
      %p231 = pneg %p122
      %p232 = pneg %p119
      %p233 = pneg %p143
      %p234 = pneg %p140
      %p235 = pneg %p169
      %p236 = pneg %p166
      %p237 = scmp.lt.s32.totalorder %s17, 1
      %s238 = scalar_select %p237, %s17, 1
      %s239 = smul.addr %s238, 12
      %s240 = smul.addr %s239, 8
      %s241 = scalar_lea.vmem %s6, %s240
      %p242 = scmp.lt.s32.totalorder %s17, 1
      %s243 = scalar_select %p242, %s17, 1
      %s244 = smul.addr %s243, 16
      %s245 = smul.addr %s244, 8
      %s246 = scalar_lea.vmem %s0, %s245
      %p247 = scmp.lt.s32.totalorder %s17, 1
      %s248 = scalar_select %p247, %s17, 1
      %s249 = smul.addr %s248, 12
      %s250 = smul.addr %s249, 8
      %s251 = scalar_lea.vmem %s6, %s250
      %v252 = vld [vmem:[%s246] sm:$0xff]
      %v253 = vld [vmem:[%s246 + $0x8] sm:$0xff]
      %v254 = vld [vmem:[%s246 + $0x10] sm:$0xff]
      %v255 = vld [vmem:[%s246 + $0x18] sm:$0xff]
      %v256 = vld [vmem:[%s246 + $0x20] sm:$0xff]
      %v257 = vld [vmem:[%s246 + $0x28] sm:$0xff]
      %v258 = vld [vmem:[%s246 + $0x30] sm:$0xff]
      %v259 = vld [vmem:[%s246 + $0x38] sm:$0xff]
      %v260 = vld [vmem:[%s246 + $0x40] sm:$0xff]
      %v261 = vld [vmem:[%s246 + $0x48] sm:$0xff]
      %v262 = vld [vmem:[%s246 + $0x50] sm:$0xff]
      %v263 = vld [vmem:[%s246 + $0x58] sm:$0xff]
      %v264 = vld [vmem:[%s246 + $0x60] sm:$0xff]
      %v265 = vld [vmem:[%s246 + $0x68] sm:$0xff]
      %v266 = vld [vmem:[%s246 + $0x70] sm:$0xff]
      %v267 = vld [vmem:[%s246 + $0x78] sm:$0xff]
      %v268 = vld [vmem:[%s1] sm:$0x7]
      %270 = vset.pattern.permute.xlu0 0
      %271 = vperm.xlu0 %270, %v252
      %v272 = vpop.permute.xlu0 %271
      %275 = vset.pattern.permute.xlu0 0
      %276 = vperm.xlu0 %275, %v253
      %v277 = vpop.permute.xlu0 %276
      %280 = vset.pattern.permute.xlu0 0
      %281 = vperm.xlu0 %280, %v254
      %v282 = vpop.permute.xlu0 %281
      %285 = vset.pattern.permute.xlu0 0
      %286 = vperm.xlu0 %285, %v255
      %v287 = vpop.permute.xlu0 %286
      %290 = vset.pattern.permute.xlu0 0
      %291 = vperm.xlu0 %290, %v256
      %v292 = vpop.permute.xlu0 %291
      %295 = vset.pattern.permute.xlu0 0
      %296 = vperm.xlu0 %295, %v257
      %v297 = vpop.permute.xlu0 %296
      %300 = vset.pattern.permute.xlu0 0
      %301 = vperm.xlu0 %300, %v258
      %v302 = vpop.permute.xlu0 %301
      %305 = vset.pattern.permute.xlu0 0
      %306 = vperm.xlu0 %305, %v259
      %v307 = vpop.permute.xlu0 %306
      %310 = vset.pattern.permute.xlu0 0
      %311 = vperm.xlu0 %310, %v260
      %v312 = vpop.permute.xlu0 %311
      %315 = vset.pattern.permute.xlu0 0
      %316 = vperm.xlu0 %315, %v261
      %v317 = vpop.permute.xlu0 %316
      %320 = vset.pattern.permute.xlu0 0
      %321 = vperm.xlu0 %320, %v262
      %v322 = vpop.permute.xlu0 %321
      %325 = vset.pattern.permute.xlu0 0
      %326 = vperm.xlu0 %325, %v263
      %v327 = vpop.permute.xlu0 %326
      %330 = vset.pattern.permute.xlu0 0
      %331 = vperm.xlu0 %330, %v264
      %v332 = vpop.permute.xlu0 %331
      %335 = vset.pattern.permute.xlu0 0
      %336 = vperm.xlu0 %335, %v265
      %v337 = vpop.permute.xlu0 %336
      %v339 = vlaneseq
      %v340 = vshrl.u32 %v339, 7
      %v341 = vsub.s32 0, %v340
      %v342 = vrot.slane %v268, %v341
      %v343 = vmul.f32 %v272, %v342
      %v344 = vmul.f32 %v277, %v342
      %v345 = vmul.f32 %v282, %v342
      %v346 = vmul.f32 %v287, %v342
      %v347 = vmul.f32 %v292, %v342
      %v348 = vmul.f32 %v297, %v342
      %v349 = vmul.f32 %v302, %v342
      %v350 = vmul.f32 %v307, %v342
      %v351 = vmul.f32 %v312, %v342
      %v352 = vmul.f32 %v317, %v342
      %v353 = vmul.f32 %v322, %v342
      %v354 = vmul.f32 %v327, %v342
      %v355 = vmul.f32 %v332, %v342
      %v356 = vmul.f32 %v337, %v342
      %358 = vset.pattern.permute.xlu0 0
      %359 = vperm.xlu0 %358, %v266
      %v360 = vpop.permute.xlu0 %359
      %v362 = vlaneseq
      %v363 = vshrl.u32 %v362, 7
      %v364 = vsub.s32 1, %v363
      %v365 = vrot.slane %v268, %v364
      %v366 = vmul.f32 %v277, %v365
      %v367 = vmul.f32 %v282, %v365
      %v368 = vmul.f32 %v287, %v365
      %v369 = vmul.f32 %v292, %v365
      %v370 = vmul.f32 %v297, %v365
      %v371 = vmul.f32 %v302, %v365
      %v372 = vmul.f32 %v307, %v365
      %v373 = vmul.f32 %v312, %v365
      %v374 = vmul.f32 %v317, %v365
      %v375 = vmul.f32 %v322, %v365
      %v376 = vmul.f32 %v327, %v365
      %v377 = vmul.f32 %v332, %v365
      %v378 = vmul.f32 %v337, %v365
      %v379 = vmul.f32 %v360, %v365
      %v380 = vadd.f32 %v343, %v366
      %v381 = vadd.f32 %v344, %v367
      %v382 = vadd.f32 %v345, %v368
      %v383 = vadd.f32 %v346, %v369
      %v384 = vadd.f32 %v347, %v370
      %v385 = vadd.f32 %v348, %v371
      %v386 = vadd.f32 %v349, %v372
      %v387 = vadd.f32 %v350, %v373
      %v388 = vadd.f32 %v351, %v374
      %v389 = vadd.f32 %v352, %v375
      %v390 = vadd.f32 %v353, %v376
      %v391 = vadd.f32 %v354, %v377
      %v392 = vadd.f32 %v355, %v378
      %v393 = vadd.f32 %v356, %v379
      %395 = vset.pattern.permute.xlu0 0
      %396 = vperm.xlu0 %395, %v267
      %v397 = vpop.permute.xlu0 %396
      %v399 = vlaneseq
      %v400 = vshrl.u32 %v399, 7
      %v401 = vsub.s32 2, %v400
      %v402 = vrot.slane %v268, %v401
      %v403 = vmul.f32 %v282, %v402
      %v404 = vmul.f32 %v287, %v402
      %v405 = vmul.f32 %v292, %v402
      %v406 = vmul.f32 %v297, %v402
      %v407 = vmul.f32 %v302, %v402
      %v408 = vmul.f32 %v307, %v402
      %v409 = vmul.f32 %v312, %v402
      %v410 = vmul.f32 %v317, %v402
      %v411 = vmul.f32 %v322, %v402
      %v412 = vmul.f32 %v327, %v402
      %v413 = vmul.f32 %v332, %v402
      %v414 = vmul.f32 %v337, %v402
      %v415 = vmul.f32 %v360, %v402
      %v416 = vmul.f32 %v397, %v402
      %v417 = vadd.f32 %v380, %v403
      %v418 = vadd.f32 %v381, %v404
      %v419 = vadd.f32 %v382, %v405
      %v420 = vadd.f32 %v383, %v406
      %v421 = vadd.f32 %v384, %v407
      %v422 = vadd.f32 %v385, %v408
      %v423 = vadd.f32 %v386, %v409
      %v424 = vadd.f32 %v387, %v410
      %v425 = vadd.f32 %v388, %v411
      %v426 = vadd.f32 %v389, %v412
      %v427 = vadd.f32 %v390, %v413
      %v428 = vadd.f32 %v391, %v414
      %v429 = vadd.f32 %v392, %v415
      %v430 = vadd.f32 %v393, %v416
      %v431 = vmax.f32 %v417, 0.0
      %v432 = vmax.f32 %v418, 0.0
      %v433 = vmax.f32 %v419, 0.0
      %v434 = vmax.f32 %v420, 0.0
      %v435 = vmax.f32 %v421, 0.0
      %v436 = vmax.f32 %v422, 0.0
      %v437 = vmax.f32 %v423, 0.0
      %v438 = vmax.f32 %v424, 0.0
      %v439 = vmax.f32 %v425, 0.0
      %v440 = vmax.f32 %v426, 0.0
      %v441 = vmax.f32 %v427, 0.0
      %v442 = vmax.f32 %v428, 0.0
      %v443 = vmax.f32 %v429, 0.0
      %v444 = vmax.f32 %v430, 0.0
      %v445 = vld [vmem:[%s2] sm:$0xff]
      %v446 = vld [vmem:[%s2 + $0x8] sm:$0xff]
      %v447 = vld [vmem:[%s2 + $0x10] sm:$0xff]
      %v448 = vld [vmem:[%s2 + $0x18] sm:$0xff]
      %v449 = vld [vmem:[%s2 + $0x20] sm:$0xff]
      %v450 = vld [vmem:[%s2 + $0x28] sm:$0xff]
      %vm451 = vcmask 130048
      %v453 = vsel %vm451, %v432, 0
      %v456 = vsel %vm451, %v433, 0
      %v459 = vsel %vm451, %v434, 0
      %v462 = vsel %vm451, %v435, 0
      %v465 = vsel %vm451, %v436, 0
      %v468 = vsel %vm451, %v437, 0
      %v471 = vsel %vm451, %v438, 0
      %v474 = vsel %vm451, %v439, 0
      %v477 = vsel %vm451, %v440, 0
      %v480 = vsel %vm451, %v441, 0
      %v483 = vsel %vm451, %v442, 0
      %v486 = vsel %vm451, %v443, 0
      %488 = vmatprep.subr.mxu0 0.0
      %489 = vmatpush1.msra.mxu0 %v447
      %490 = vmatprep.subr.mxu0 0.0
      %491 = vmatpush1.msra.mxu0 %v448
      %492 = vmatprep.subr.mxu0 0.0
      %493 = vmatpush1.msra.mxu0 0.0
      %494 = vmatprep.subr.mxu0 0.0
      %495 = vmatpush1.msra.mxu0 0.0
      %496 = vmatprep.subr.mxu0 0.0
      %497 = vmatpush1.msra.mxu0 0.0
      %498 = vmatprep.subr.mxu0 0.0
      %499 = vmatpush1.msra.mxu0 0.0
      %500 = vmatprep.subr.mxu0 0.0
      %501 = vmatpush1.msra.mxu0 0.0
      %502 = vmatprep.subr.mxu0 0.0
      %503 = vmatpush1.msra.mxu0 0.0
      %504 = vmatprep.subr.mxu0 0.0
      %505 = vmatpush1.msra.mxu0 0.0
      %506 = vmatprep.subr.mxu0 0.0
      %507 = vmatpush1.msra.mxu0 0.0
      %508 = vmatprep.subr.mxu0 0.0
      %509 = vmatpush1.msra.mxu0 0.0
      %510 = vmatprep.subr.mxu0 0.0
      %511 = vmatpush1.msra.mxu0 0.0
      %512 = vmatprep.subr.mxu0 0.0
      %513 = vmatpush1.msra.mxu0 0.0
      %514 = vmatprep.subr.mxu0 0.0
      %515 = vmatpush1.msra.mxu0 0.0
      %516 = vmatprep.subr.mxu0 0.0
      %517 = vmatpush1.msra.mxu0 0.0
      %518 = vmatprep.subr.mxu0 0.0
      %519 = vmatpush1.msra.mxu0 0.0
      %520 = vmatprep.subr.mxu0 0.0
      %521 = vmatpush1.msra.mxu0 0.0
      %522 = vmatprep.subr.mxu0 0.0
      %523 = vmatpush1.msra.mxu0 0.0
      %524 = vmatprep.subr.mxu0 0.0
      %525 = vmatpush1.msra.mxu0 0.0
      %526 = vmatprep.subr.mxu0 0.0
      %527 = vmatpush1.msra.mxu0 0.0
      %528 = vmatprep.subr.mxu0 0.0
      %529 = vmatpush1.msra.mxu0 0.0
      %530 = vmatprep.subr.mxu0 0.0
      %531 = vmatpush1.msra.mxu0 0.0
      %532 = vmatprep.subr.mxu0 0.0
      %533 = vmatpush1.msra.mxu0 0.0
      %534 = vmatprep.subr.mxu0 0.0
      %535 = vmatpush1.msra.mxu0 0.0
      %536 = vmatprep.subr.mxu0 0.0
      %537 = vmatpush1.msra.mxu0 0.0
      %538 = vmatprep.subr.mxu0 0.0
      %539 = vmatpush1.msra.mxu0 0.0
      %540 = vmatprep.subr.mxu0 0.0
      %541 = vmatpush1.msra.mxu0 0.0
      %542 = vmatprep.subr.mxu0 0.0
      %543 = vmatpush1.msra.mxu0 0.0
      %544 = vmatprep.subr.mxu0 0.0
      %545 = vmatpush1.msra.mxu0 0.0
      %546 = vmatprep.subr.mxu0 0.0
      %547 = vmatpush1.msra.mxu0 0.0
      %548 = vmatprep.subr.mxu0 0.0
      %549 = vmatpush1.msra.mxu0 0.0
      %550 = vmatprep.subr.mxu0 0.0
      %551 = vmatpush1.msra.mxu0 0.0
      %552 = vmatprep.mubr.f32.mxu0 0.0
      %553 = vmatmul.mubr.f32.gmra.mrb[0].mxu0 %v453
      %v554 = vpop.f32.mrb[0].mxu0
      %v555 = vadd.f32 0.0, %v554
      %v556 = vpop.f32.mrb[0].mxu0
      %557 = vmatprep.mubr.f32.mxu0 0.0
      %558 = vmatmul.mubr.f32.gmra.mrb[0].mxu0 %v456
      %v559 = vpop.f32.mrb[0].mxu0
      %v560 = vadd.f32 0.0, %v559
      %v561 = vpop.f32.mrb[0].mxu0
      %562 = vmatprep.mubr.f32.mxu0 0.0
      %563 = vmatmul.mubr.f32.gmra.mrb[0].mxu0 %v459
      %v564 = vpop.f32.mrb[0].mxu0
      %v565 = vadd.f32 0.0, %v564
      %v566 = vpop.f32.mrb[0].mxu0
      %567 = vmatprep.mubr.f32.mxu0 0.0
      %568 = vmatmul.mubr.f32.gmra.mrb[0].mxu0 %v462
      %v569 = vpop.f32.mrb[0].mxu0
      %v570 = vadd.f32 0.0, %v569
      %v571 = vpop.f32.mrb[0].mxu0
      %572 = vmatprep.mubr.f32.mxu0 0.0
      %573 = vmatmul.mubr.f32.gmra.mrb[0].mxu0 %v465
      %v574 = vpop.f32.mrb[0].mxu0
      %v575 = vadd.f32 0.0, %v574
      %v576 = vpop.f32.mrb[0].mxu0
      %577 = vmatprep.mubr.f32.mxu0 0.0
      %578 = vmatmul.mubr.f32.gmra.mrb[0].mxu0 %v468
      %v579 = vpop.f32.mrb[0].mxu0
      %v580 = vadd.f32 0.0, %v579
      %v581 = vpop.f32.mrb[0].mxu0
      %582 = vmatprep.mubr.f32.mxu0 0.0
      %583 = vmatmul.mubr.f32.gmra.mrb[0].mxu0 %v471
      %v584 = vpop.f32.mrb[0].mxu0
      %v585 = vadd.f32 0.0, %v584
      %v586 = vpop.f32.mrb[0].mxu0
      %587 = vmatprep.mubr.f32.mxu0 0.0
      %588 = vmatmul.mubr.f32.gmra.mrb[0].mxu0 %v474
      %v589 = vpop.f32.mrb[0].mxu0
      %v590 = vadd.f32 0.0, %v589
      %v591 = vpop.f32.mrb[0].mxu0
      %592 = vmatprep.mubr.f32.mxu0 0.0
      %593 = vmatmul.mubr.f32.gmra.mrb[0].mxu0 %v477
      %v594 = vpop.f32.mrb[0].mxu0
      %v595 = vadd.f32 0.0, %v594
      %v596 = vpop.f32.mrb[0].mxu0
      %597 = vmatprep.mubr.f32.mxu0 0.0
      %598 = vmatmul.mubr.f32.gmra.mrb[0].mxu0 %v480
      %v599 = vpop.f32.mrb[0].mxu0
      %v600 = vadd.f32 0.0, %v599
      %v601 = vpop.f32.mrb[0].mxu0
      %602 = vmatprep.mubr.f32.mxu0 0.0
      %603 = vmatmul.mubr.f32.gmra.mrb[0].mxu0 %v483
      %v604 = vpop.f32.mrb[0].mxu0
      %v605 = vadd.f32 0.0, %v604
      %v606 = vpop.f32.mrb[0].mxu0
      %607 = vmatprep.mubr.f32.mxu0 0.0
      %608 = vmatmul.mubr.f32.gmra.mrb[0].mxu0 %v486
      %v609 = vpop.f32.mrb[0].mxu0
      %v610 = vadd.f32 0.0, %v609
      %v611 = vpop.f32.mrb[0].mxu0
      %612 = vdwg.mxu0
      %v614 = vsel %vm451, %v431, 0
      %616 = vmatprep.subr.mxu0 0.0
      %617 = vmatpush1.msra.mxu0 %v445
      %618 = vmatprep.subr.mxu0 0.0
      %619 = vmatpush1.msra.mxu0 %v446
      %620 = vmatprep.subr.mxu0 0.0
      %621 = vmatpush1.msra.mxu0 0.0
      %622 = vmatprep.subr.mxu0 0.0
      %623 = vmatpush1.msra.mxu0 0.0
      %624 = vmatprep.subr.mxu0 0.0
      %625 = vmatpush1.msra.mxu0 0.0
      %626 = vmatprep.subr.mxu0 0.0
      %627 = vmatpush1.msra.mxu0 0.0
      %628 = vmatprep.subr.mxu0 0.0
      %629 = vmatpush1.msra.mxu0 0.0
      %630 = vmatprep.subr.mxu0 0.0
      %631 = vmatpush1.msra.mxu0 0.0
      %632 = vmatprep.subr.mxu0 0.0
      %633 = vmatpush1.msra.mxu0 0.0
      %634 = vmatprep.subr.mxu0 0.0
      %635 = vmatpush1.msra.mxu0 0.0
      %636 = vmatprep.subr.mxu0 0.0
      %637 = vmatpush1.msra.mxu0 0.0
      %638 = vmatprep.subr.mxu0 0.0
      %639 = vmatpush1.msra.mxu0 0.0
      %640 = vmatprep.subr.mxu0 0.0
      %641 = vmatpush1.msra.mxu0 0.0
      %642 = vmatprep.subr.mxu0 0.0
      %643 = vmatpush1.msra.mxu0 0.0
      %644 = vmatprep.subr.mxu0 0.0
      %645 = vmatpush1.msra.mxu0 0.0
      %646 = vmatprep.subr.mxu0 0.0
      %647 = vmatpush1.msra.mxu0 0.0
      %648 = vmatprep.subr.mxu0 0.0
      %649 = vmatpush1.msra.mxu0 0.0
      %650 = vmatprep.subr.mxu0 0.0
      %651 = vmatpush1.msra.mxu0 0.0
      %652 = vmatprep.subr.mxu0 0.0
      %653 = vmatpush1.msra.mxu0 0.0
      %654 = vmatprep.subr.mxu0 0.0
      %655 = vmatpush1.msra.mxu0 0.0
      %656 = vmatprep.subr.mxu0 0.0
      %657 = vmatpush1.msra.mxu0 0.0
      %658 = vmatprep.subr.mxu0 0.0
      %659 = vmatpush1.msra.mxu0 0.0
      %660 = vmatprep.subr.mxu0 0.0
      %661 = vmatpush1.msra.mxu0 0.0
      %662 = vmatprep.subr.mxu0 0.0
      %663 = vmatpush1.msra.mxu0 0.0
      %664 = vmatprep.subr.mxu0 0.0
      %665 = vmatpush1.msra.mxu0 0.0
      %666 = vmatprep.subr.mxu0 0.0
      %667 = vmatpush1.msra.mxu0 0.0
      %668 = vmatprep.subr.mxu0 0.0
      %669 = vmatpush1.msra.mxu0 0.0
      %670 = vmatprep.subr.mxu0 0.0
      %671 = vmatpush1.msra.mxu0 0.0
      %672 = vmatprep.subr.mxu0 0.0
      %673 = vmatpush1.msra.mxu0 0.0
      %674 = vmatprep.subr.mxu0 0.0
      %675 = vmatpush1.msra.mxu0 0.0
      %676 = vmatprep.subr.mxu0 0.0
      %677 = vmatpush1.msra.mxu0 0.0
      %678 = vmatprep.subr.mxu0 0.0
      %679 = vmatpush1.msra.mxu0 0.0
      %680 = vmatprep.mubr.f32.mxu0 0.0
      %681 = vmatmul.mubr.f32.gmra.mrb[0].mxu0 %v614
      %v682 = vpop.f32.mrb[0].mxu0
      %v683 = vadd.f32 %v555, %v682
      %v684 = vpop.f32.mrb[0].mxu0
      %685 = vmatprep.mubr.f32.mxu0 0.0
      %686 = vmatmul.mubr.f32.gmra.mrb[0].mxu0 %v453
      %v687 = vpop.f32.mrb[0].mxu0
      %v688 = vadd.f32 %v560, %v687
      %v689 = vpop.f32.mrb[0].mxu0
      %690 = vmatprep.mubr.f32.mxu0 0.0
      %691 = vmatmul.mubr.f32.gmra.mrb[0].mxu0 %v456
      %v692 = vpop.f32.mrb[0].mxu0
      %v693 = vadd.f32 %v565, %v692
      %v694 = vpop.f32.mrb[0].mxu0
      %695 = vmatprep.mubr.f32.mxu0 0.0
      %696 = vmatmul.mubr.f32.gmra.mrb[0].mxu0 %v459
      %v697 = vpop.f32.mrb[0].mxu0
      %v698 = vadd.f32 %v570, %v697
      %v699 = vpop.f32.mrb[0].mxu0
      %700 = vmatprep.mubr.f32.mxu0 0.0
      %701 = vmatmul.mubr.f32.gmra.mrb[0].mxu0 %v462
      %v702 = vpop.f32.mrb[0].mxu0
      %v703 = vadd.f32 %v575, %v702
      %v704 = vpop.f32.mrb[0].mxu0
      %705 = vmatprep.mubr.f32.mxu0 0.0
      %706 = vmatmul.mubr.f32.gmra.mrb[0].mxu0 %v465
      %v707 = vpop.f32.mrb[0].mxu0
      %v708 = vadd.f32 %v580, %v707
      %v709 = vpop.f32.mrb[0].mxu0
      %710 = vmatprep.mubr.f32.mxu0 0.0
      %711 = vmatmul.mubr.f32.gmra.mrb[0].mxu0 %v468
      %v712 = vpop.f32.mrb[0].mxu0
      %v713 = vadd.f32 %v585, %v712
      %v714 = vpop.f32.mrb[0].mxu0
      %715 = vmatprep.mubr.f32.mxu0 0.0
      %716 = vmatmul.mubr.f32.gmra.mrb[0].mxu0 %v471
      %v717 = vpop.f32.mrb[0].mxu0
      %v718 = vadd.f32 %v590, %v717
      %v719 = vpop.f32.mrb[0].mxu0
      %720 = vmatprep.mubr.f32.mxu0 0.0
      %721 = vmatmul.mubr.f32.gmra.mrb[0].mxu0 %v474
      %v722 = vpop.f32.mrb[0].mxu0
      %v723 = vadd.f32 %v595, %v722
      %v724 = vpop.f32.mrb[0].mxu0
      %725 = vmatprep.mubr.f32.mxu0 0.0
      %726 = vmatmul.mubr.f32.gmra.mrb[0].mxu0 %v477
      %v727 = vpop.f32.mrb[0].mxu0
      %v728 = vadd.f32 %v600, %v727
      %v729 = vpop.f32.mrb[0].mxu0
      %730 = vmatprep.mubr.f32.mxu0 0.0
      %731 = vmatmul.mubr.f32.gmra.mrb[0].mxu0 %v480
      %v732 = vpop.f32.mrb[0].mxu0
      %v733 = vadd.f32 %v605, %v732
      %v734 = vpop.f32.mrb[0].mxu0
      %735 = vmatprep.mubr.f32.mxu0 0.0
      %736 = vmatmul.mubr.f32.gmra.mrb[0].mxu0 %v483
      %v737 = vpop.f32.mrb[0].mxu0
      %v738 = vadd.f32 %v610, %v737
      %v739 = vpop.f32.mrb[0].mxu0
      %740 = vdwg.mxu0
      %v742 = vsel %vm451, %v444, 0
      %744 = vmatprep.subr.mxu0 0.0
      %745 = vmatpush1.msra.mxu0 %v449
      %746 = vmatprep.subr.mxu0 0.0
      %747 = vmatpush1.msra.mxu0 %v450
      %748 = vmatprep.subr.mxu0 0.0
      %749 = vmatpush1.msra.mxu0 0.0
      %750 = vmatprep.subr.mxu0 0.0
      %751 = vmatpush1.msra.mxu0 0.0
      %752 = vmatprep.subr.mxu0 0.0
      %753 = vmatpush1.msra.mxu0 0.0
      %754 = vmatprep.subr.mxu0 0.0
      %755 = vmatpush1.msra.mxu0 0.0
      %756 = vmatprep.subr.mxu0 0.0
      %757 = vmatpush1.msra.mxu0 0.0
      %758 = vmatprep.subr.mxu0 0.0
      %759 = vmatpush1.msra.mxu0 0.0
      %760 = vmatprep.subr.mxu0 0.0
      %761 = vmatpush1.msra.mxu0 0.0
      %762 = vmatprep.subr.mxu0 0.0
      %763 = vmatpush1.msra.mxu0 0.0
      %764 = vmatprep.subr.mxu0 0.0
      %765 = vmatpush1.msra.mxu0 0.0
      %766 = vmatprep.subr.mxu0 0.0
      %767 = vmatpush1.msra.mxu0 0.0
      %768 = vmatprep.subr.mxu0 0.0
      %769 = vmatpush1.msra.mxu0 0.0
      %770 = vmatprep.subr.mxu0 0.0
      %771 = vmatpush1.msra.mxu0 0.0
      %772 = vmatprep.subr.mxu0 0.0
      %773 = vmatpush1.msra.mxu0 0.0
      %774 = vmatprep.subr.mxu0 0.0
      %775 = vmatpush1.msra.mxu0 0.0
      %776 = vmatprep.subr.mxu0 0.0
      %777 = vmatpush1.msra.mxu0 0.0
      %778 = vmatprep.subr.mxu0 0.0
      %779 = vmatpush1.msra.mxu0 0.0
      %780 = vmatprep.subr.mxu0 0.0
      %781 = vmatpush1.msra.mxu0 0.0
      %782 = vmatprep.subr.mxu0 0.0
      %783 = vmatpush1.msra.mxu0 0.0
      %784 = vmatprep.subr.mxu0 0.0
      %785 = vmatpush1.msra.mxu0 0.0
      %786 = vmatprep.subr.mxu0 0.0
      %787 = vmatpush1.msra.mxu0 0.0
      %788 = vmatprep.subr.mxu0 0.0
      %789 = vmatpush1.msra.mxu0 0.0
      %790 = vmatprep.subr.mxu0 0.0
      %791 = vmatpush1.msra.mxu0 0.0
      %792 = vmatprep.subr.mxu0 0.0
      %793 = vmatpush1.msra.mxu0 0.0
      %794 = vmatprep.subr.mxu0 0.0
      %795 = vmatpush1.msra.mxu0 0.0
      %796 = vmatprep.subr.mxu0 0.0
      %797 = vmatpush1.msra.mxu0 0.0
      %798 = vmatprep.subr.mxu0 0.0
      %799 = vmatpush1.msra.mxu0 0.0
      %800 = vmatprep.subr.mxu0 0.0
      %801 = vmatpush1.msra.mxu0 0.0
      %802 = vmatprep.subr.mxu0 0.0
      %803 = vmatpush1.msra.mxu0 0.0
      %804 = vmatprep.subr.mxu0 0.0
      %805 = vmatpush1.msra.mxu0 0.0
      %806 = vmatprep.subr.mxu0 0.0
      %807 = vmatpush1.msra.mxu0 0.0
      %808 = vmatprep.mubr.f32.mxu0 0.0
      %809 = vmatmul.mubr.f32.gmra.mrb[0].mxu0 %v456
      %v810 = vpop.f32.mrb[0].mxu0
      %v811 = vadd.f32 0.0, %v810
      %v812 = vpop.f32.mrb[0].mxu0
      %813 = vmatprep.mubr.f32.mxu0 0.0
      %814 = vmatmul.mubr.f32.gmra.mrb[0].mxu0 %v459
      %v815 = vpop.f32.mrb[0].mxu0
      %v816 = vadd.f32 0.0, %v815
      %v817 = vpop.f32.mrb[0].mxu0
      %818 = vmatprep.mubr.f32.mxu0 0.0
      %819 = vmatmul.mubr.f32.gmra.mrb[0].mxu0 %v462
      %v820 = vpop.f32.mrb[0].mxu0
      %v821 = vadd.f32 0.0, %v820
      %v822 = vpop.f32.mrb[0].mxu0
      %823 = vmatprep.mubr.f32.mxu0 0.0
      %824 = vmatmul.mubr.f32.gmra.mrb[0].mxu0 %v465
      %v825 = vpop.f32.mrb[0].mxu0
      %v826 = vadd.f32 0.0, %v825
      %v827 = vpop.f32.mrb[0].mxu0
      %828 = vmatprep.mubr.f32.mxu0 0.0
      %829 = vmatmul.mubr.f32.gmra.mrb[0].mxu0 %v468
      %v830 = vpop.f32.mrb[0].mxu0
      %v831 = vadd.f32 0.0, %v830
      %v832 = vpop.f32.mrb[0].mxu0
      %833 = vmatprep.mubr.f32.mxu0 0.0
      %834 = vmatmul.mubr.f32.gmra.mrb[0].mxu0 %v471
      %v835 = vpop.f32.mrb[0].mxu0
      %v836 = vadd.f32 0.0, %v835
      %v837 = vpop.f32.mrb[0].mxu0
      %838 = vmatprep.mubr.f32.mxu0 0.0
      %839 = vmatmul.mubr.f32.gmra.mrb[0].mxu0 %v474
      %v840 = vpop.f32.mrb[0].mxu0
      %v841 = vadd.f32 0.0, %v840
      %v842 = vpop.f32.mrb[0].mxu0
      %843 = vmatprep.mubr.f32.mxu0 0.0
      %844 = vmatmul.mubr.f32.gmra.mrb[0].mxu0 %v477
      %v845 = vpop.f32.mrb[0].mxu0
      %v846 = vadd.f32 0.0, %v845
      %v847 = vpop.f32.mrb[0].mxu0
      %848 = vmatprep.mubr.f32.mxu0 0.0
      %849 = vmatmul.mubr.f32.gmra.mrb[0].mxu0 %v480
      %v850 = vpop.f32.mrb[0].mxu0
      %v851 = vadd.f32 0.0, %v850
      %v852 = vpop.f32.mrb[0].mxu0
      %853 = vmatprep.mubr.f32.mxu0 0.0
      %854 = vmatmul.mubr.f32.gmra.mrb[0].mxu0 %v483
      %v855 = vpop.f32.mrb[0].mxu0
      %v856 = vadd.f32 0.0, %v855
      %v857 = vpop.f32.mrb[0].mxu0
      %858 = vmatprep.mubr.f32.mxu0 0.0
      %859 = vmatmul.mubr.f32.gmra.mrb[0].mxu0 %v486
      %v860 = vpop.f32.mrb[0].mxu0
      %v861 = vadd.f32 0.0, %v860
      %v862 = vpop.f32.mrb[0].mxu0
      %863 = vmatprep.mubr.f32.mxu0 0.0
      %864 = vmatmul.mubr.f32.gmra.mrb[0].mxu0 %v742
      %v865 = vpop.f32.mrb[0].mxu0
      %v866 = vadd.f32 0.0, %v865
      %v867 = vpop.f32.mrb[0].mxu0
      %868 = vdwg.mxu0
      %v869 = vadd.f32 %v683, %v811
      %v870 = vadd.f32 %v688, %v816
      %v871 = vadd.f32 %v693, %v821
      %v872 = vadd.f32 %v698, %v826
      %v873 = vadd.f32 %v703, %v831
      %v874 = vadd.f32 %v708, %v836
      %v875 = vadd.f32 %v713, %v841
      %v876 = vadd.f32 %v718, %v846
      %v877 = vadd.f32 %v723, %v851
      %v878 = vadd.f32 %v728, %v856
      %v879 = vadd.f32 %v733, %v861
      %v880 = vadd.f32 %v738, %v866
      %v881 = vld [vmem:[%s3] sm:$0x1]
      %v883 = vlaneseq
      %v884 = vshrl.u32 %v883, 7
      %v885 = vsub.s32 0, %v884
      %v886 = vrot.slane %v881, %v885
      %v888 = vadd.f32 %v869, %v886
      %v889 = vadd.f32 %v870, %v886
      %v890 = vadd.f32 %v871, %v886
      %v891 = vadd.f32 %v872, %v886
      %v892 = vadd.f32 %v873, %v886
      %v893 = vadd.f32 %v874, %v886
      %v894 = vadd.f32 %v875, %v886
      %v895 = vadd.f32 %v876, %v886
      %v896 = vadd.f32 %v877, %v886
      %v897 = vadd.f32 %v878, %v886
      %v898 = vadd.f32 %v879, %v886
      %v899 = vadd.f32 %v880, %v886
      %v900 = vmax.f32 %v888, 0.0
      %v901 = vmax.f32 %v889, 0.0
      %v902 = vmax.f32 %v890, 0.0
      %v903 = vmax.f32 %v891, 0.0
      %v904 = vmax.f32 %v892, 0.0
      %v905 = vmax.f32 %v893, 0.0
      %v906 = vmax.f32 %v894, 0.0
      %v907 = vmax.f32 %v895, 0.0
      %v908 = vmax.f32 %v896, 0.0
      %v909 = vmax.f32 %v897, 0.0
      %v910 = vmax.f32 %v898, 0.0
      %v911 = vmax.f32 %v899, 0.0
      %v912 = vld [vmem:[%s4] sm:$0x1]
      %v914 = vlaneseq
      %v915 = vshrl.u32 %v914, 7
      %v916 = vsub.s32 0, %v915
      %v917 = vrot.slane %v912, %v916
      %v919 = vmul.f32 %v900, %v917
      %v920 = vmul.f32 %v901, %v917
      %v921 = vmul.f32 %v902, %v917
      %v922 = vmul.f32 %v903, %v917
      %v923 = vmul.f32 %v904, %v917
      %v924 = vmul.f32 %v905, %v917
      %v925 = vmul.f32 %v906, %v917
      %v926 = vmul.f32 %v907, %v917
      %v927 = vmul.f32 %v908, %v917
      %v928 = vmul.f32 %v909, %v917
      %v929 = vmul.f32 %v910, %v917
      %v930 = vmul.f32 %v911, %v917
      %v931 = vld [vmem:[%s5] sm:$0x1]
      %v933 = vlaneseq
      %v934 = vshrl.u32 %v933, 7
      %v935 = vsub.s32 0, %v934
      %v936 = vrot.slane %v931, %v935
      %v938 = vadd.f32 %v919, %v936
      %v939 = vadd.f32 %v920, %v936
      %v940 = vadd.f32 %v921, %v936
      %v941 = vadd.f32 %v922, %v936
      %v942 = vadd.f32 %v923, %v936
      %v943 = vadd.f32 %v924, %v936
      %v944 = vadd.f32 %v925, %v936
      %v945 = vadd.f32 %v926, %v936
      %v946 = vadd.f32 %v927, %v936
      %v947 = vadd.f32 %v928, %v936
      %v948 = vadd.f32 %v929, %v936
      %v949 = vadd.f32 %v930, %v936
      %950 = vst [vmem:[%s251] sm:$0xff] %v938
      %951 = vst [vmem:[%s251 + $0x8] sm:$0xff] %v939
      %952 = vst [vmem:[%s251 + $0x10] sm:$0xff] %v940
      %953 = vst [vmem:[%s251 + $0x18] sm:$0xff] %v941
      %954 = vst [vmem:[%s251 + $0x20] sm:$0xff] %v942
      %955 = vst [vmem:[%s251 + $0x28] sm:$0xff] %v943
      %956 = vst [vmem:[%s251 + $0x30] sm:$0xff] %v944
      %957 = vst [vmem:[%s251 + $0x38] sm:$0xff] %v945
      %958 = vst [vmem:[%s251 + $0x40] sm:$0xff] %v946
      %959 = vst [vmem:[%s251 + $0x48] sm:$0xff] %v947
      %960 = vst [vmem:[%s251 + $0x50] sm:$0xff] %v948
      %961 = vst [vmem:[%s251 + $0x58] sm:$0xff] %v949
      %p962 = scmp.lt.s32.totalorder %s17, 1
      %s963 = scalar_select %p962, %s17, 1
      %s964 = smul.addr %s963, 12
      %s965 = smul.addr %s964, 8
      %s966 = scalar_lea.vmem %s6, %s965
      // Predicated region
      $region45: #{spatial_block_forward.1} parent=43 // pred_check
        %p967 = pneg %p166
      $region46: #{spatial_block_forward.1} parent=43 // pred_check_branch
        %969 = sbr.rel (%p967) target = $region48
      $region47: #{spatial_block_forward.1} parent=43 // pred_region
        _
      $region48: #{spatial_block_forward.1} parent=43 // pred_fallthru
        _
    $region44: #{spatial_block_forward.1} parent=5 // pred_fallthru
      _
    %p970 = scmp.le.s32.totalorder 2, %s12
    // Predicated region
    $region49: #{spatial_block_forward.1} parent=5 // pred_check
      %p971 = pneg %p970
    $region50: #{spatial_block_forward.1} parent=5 // pred_check_branch
      %973 = sbr.rel (%p971) target = $region52
    $region51: #{spatial_block_forward.1} parent=5 // pred_region
      %s974 = ssub.s32 %s12, 2
      // Predicated region
      $region53: #{spatial_block_forward.1} parent=51 // pred_check
        %p975 = pneg %p172
      $region54: #{spatial_block_forward.1} parent=51 // pred_check_branch
        %977 = sbr.rel (%p975) target = $region56
      $region55: #{spatial_block_forward.1} parent=51 // pred_region
        %p978 = scmp.lt.s32.totalorder %s18, 1
        %s979 = scalar_select %p978, %s18, 1
        %s980 = smul.addr %s979, 12
        %s981 = smul.addr %s980, 8
        %s982 = scalar_lea.vmem %s6, %s981
      $region56: #{spatial_block_forward.1} parent=51 // pred_fallthru
        _
    $region52: #{spatial_block_forward.1} parent=5 // pred_fallthru
      _
  $region6: #{spatial_block_forward.1} parent=0 // loop_footer
    %s16 = sadd.s32 1, %s12
  $region7: #{spatial_block_forward.1} parent=0 // loop_footer_branch
    %11 = sbr.rel target = $region3
  $region8: #{spatial_block_forward.1} parent=0 // loop_exit
    _

</llo_original>
